<compile_context>
chip_gen: v5e
topology: v5e:2x2
jax: 0.10.0
libtpu: 0.0.40
codegen_flags: <defaults>
</compile_context>

<pallas_src>
import functools
import math

import jax
import jax.numpy as jnp
from jax.experimental import pallas as pl
from jax.experimental.pallas import tpu as pltpu


def _transformer_block_kernel(xq_ref, xkv_ref, wq_ref, wk_ref, wv_ref,
                              w1_ref, w2_ref, o_ref, attn_ref, *, n_heads):
    xq = xq_ref[0]            # (TQ, D) bf16 — queries + residual rows for this tile
    xkv = xkv_ref[0]          # (S,  D) bf16 — full sequence for keys/values
    TQ, D = xq.shape
    S = xkv.shape[0]
    dp = D // n_heads
    scale = 1.0 / math.sqrt(dp)

    # Fused, lane-dense projections (bf16 in, f32 accumulation on the MXU).
    q_all = jnp.dot(xq, wq_ref[...], preferred_element_type=jnp.float32)    # (TQ, D)
    k_all = jnp.dot(xkv, wk_ref[...], preferred_element_type=jnp.float32)   # (S, D)
    v_all = jnp.dot(xkv, wv_ref[...], preferred_element_type=jnp.float32)   # (S, D)

    # Causal mask for this query tile, built from tile-offset iotas.
    q0 = pl.program_id(1) * TQ
    row = q0 + jax.lax.broadcasted_iota(jnp.int32, (TQ, S), 0)
    col = jax.lax.broadcasted_iota(jnp.int32, (TQ, S), 1)
    allowed = col <= row

    # Scale folded into q (f32) before the bf16 cast for the score matmul.
    q_bf = (q_all * scale).astype(jnp.bfloat16)
    k_bf = k_all.astype(jnp.bfloat16)
    v_bf = v_all.astype(jnp.bfloat16)

    for h in range(n_heads):                    # static -> unrolled at trace time
        lo, hi = h * dp, (h + 1) * dp
        qh = q_bf[:, lo:hi]                     # (TQ, dp)
        kh = k_bf[:, lo:hi]                     # (S, dp)
        vh = v_bf[:, lo:hi]                     # (S, dp)

        # q @ k^T via dot_general contracting the last dim of both (no k.T).
        s = jax.lax.dot_general(qh, kh, (((1,), (1,)), ((), ())),
                                preferred_element_type=jnp.float32)          # (TQ, S)
        s = jnp.where(allowed, s, -1e30)        # finite mask value (bf16-safe)

        # Numerically-stable softmax in f32; reciprocal on the EUP slot.
        m = jnp.max(s, axis=-1, keepdims=True)
        p = jnp.exp(s - m)
        denom = jnp.sum(p, axis=-1, keepdims=True)
        p = p * pl.reciprocal(denom, approx=True)

        ctx = jnp.dot(p.astype(jnp.bfloat16), vh,
                      preferred_element_type=jnp.float32)                    # (TQ, dp)
        attn_ref[:, lo:hi] = ctx                # write head into lane-dense scratch

    x_f32 = xq.astype(jnp.float32)
    a = (x_f32 + attn_ref[...]).astype(jnp.bfloat16)        # first residual

    # MLP: Linear -> ReLU -> Linear -> ReLU (no biases), f32 accumulation.
    h1 = jnp.maximum(jnp.dot(a, w1_ref[...], preferred_element_type=jnp.float32), 0.0)
    mlp = jnp.maximum(jnp.dot(h1.astype(jnp.bfloat16), w2_ref[...],
                              preferred_element_type=jnp.float32), 0.0)

    o_ref[0] = (x_f32 + mlp).astype(o_ref.dtype)            # second residual


def transformer_block(x, wq, wk, wv, w1, w2):
    """x: (B,S,D) f32. wq/wk/wv: (n_heads, D, d_proj) per-head weights (pre-
    transposed so q_h = x @ wq[h]).  w1: (D, hidden), w2: (hidden, D)."""
    B, S, D = x.shape
    n_heads, _, d_proj = wq.shape
    hidden = w1.shape[1]

    # Fuse per-head weights into lane-dense (D, n_heads*d_proj) slabs; head h
    # occupies output columns [h*d_proj, (h+1)*d_proj) (matches concat order).
    def fuse(w):
        return jnp.transpose(w, (1, 0, 2)).reshape(D, n_heads * d_proj)

    wq_f = fuse(wq).astype(jnp.bfloat16)
    wk_f = fuse(wk).astype(jnp.bfloat16)
    wv_f = fuse(wv).astype(jnp.bfloat16)
    w1_b = w1.astype(jnp.bfloat16)
    w2_b = w2.astype(jnp.bfloat16)
    x_b = x.astype(jnp.bfloat16)

    # Query-tile size: 128 rows when it divides S, else the whole sequence.
    TQ = 128 if S % 128 == 0 else S
    n_q = S // TQ

    # Explicit scoped-VMEM budget: double-buffered tiles + resident weights +
    # scratch + score temporaries, with 2x headroom (clamped to sane bounds).
    bf16, f32 = 2, 4
    est = (2 * TQ * D * bf16                 # x q-tile (double-buffered)
           + 2 * TQ * D * f32                # output tile (double-buffered)
           + 2 * S * D * bf16                # full-S x block for K/V
           + 3 * D * (n_heads * d_proj) * bf16
           + 2 * D * hidden * bf16
           + TQ * D * f32                    # attn scratch
           + 4 * TQ * S * f32)               # scores / softmax temporaries
    vmem_limit = min(100 << 20, max(16 << 20, int(2 * est)))

    kernel = functools.partial(_transformer_block_kernel, n_heads=n_heads)

    return pl.pallas_call(
        kernel,
        out_shape=jax.ShapeDtypeStruct((B, S, D), x.dtype),
        grid=(B, n_q),
        in_specs=[
            pl.BlockSpec((1, TQ, D), lambda b, qi: (b, qi, 0)),            # x (queries)
            pl.BlockSpec((1, S, D), lambda b, qi: (b, 0, 0)),              # x (keys/values)
            pl.BlockSpec((D, n_heads * d_proj), lambda b, qi: (0, 0)),     # fused Wq
            pl.BlockSpec((D, n_heads * d_proj), lambda b, qi: (0, 0)),     # fused Wk
            pl.BlockSpec((D, n_heads * d_proj), lambda b, qi: (0, 0)),     # fused Wv
            pl.BlockSpec((D, hidden), lambda b, qi: (0, 0)),               # W1
            pl.BlockSpec((hidden, D), lambda b, qi: (0, 0)),               # W2
        ],
        out_specs=pl.BlockSpec((1, TQ, D), lambda b, qi: (b, qi, 0)),
        scratch_shapes=[pltpu.VMEM((TQ, D), jnp.float32)],                 # attn heads
        compiler_params=pltpu.CompilerParams(
            dimension_semantics=("parallel", "parallel"),
            vmem_limit_bytes=vmem_limit,
        ),
    )(x_b, x_b, wq_f, wk_f, wv_f, w1_b, w2_b)


def transformer_block_ref(x, wq, wk, wv, w1, w2):
    """Pure-JAX (f32) reference reproducing the PyTorch forward semantics."""
    B, S, D = x.shape
    n_heads, _, d_proj = wq.shape
    scale = 1.0 / math.sqrt(d_proj)
    mask = jnp.triu(jnp.ones((S, S), dtype=bool), k=1)
    heads = []
    for h in range(n_heads):
        q = x @ wq[h]
        k = x @ wk[h]
        v = x @ wv[h]
        s = jnp.einsum("bsd,btd->bst", q, k) * scale
        s = jnp.where(mask[None], -jnp.inf, s)
        p = jax.nn.softmax(s, axis=-1)
        heads.append(jnp.einsum("bst,btd->bsd", p, v))
    attn = jnp.concatenate(heads, axis=-1)
    a = x + attn
    mlp = jnp.maximum(jnp.maximum(a @ w1, 0.0) @ w2, 0.0)
    return x + mlp


if __name__ == "__main__":
    # Small shapes consistent with the module's forward.
    B, S, d_model, n_heads, hidden = 2, 8, 32, 4, 64
    d_proj = d_model // n_heads

    key = jax.random.PRNGKey(0)
    kx, kq, kk, kv, k1, k2 = jax.random.split(key, 6)

    x = jax.random.normal(kx, (B, S, d_model), dtype=jnp.float32)
    # Per-head projection weights, stored pre-transposed: (n_heads, d_model, d_proj)
    wq = jax.random.normal(kq, (n_heads, d_model, d_proj), dtype=jnp.float32) * 0.1
    wk = jax.random.normal(kk, (n_heads, d_model, d_proj), dtype=jnp.float32) * 0.1
    wv = jax.random.normal(kv, (n_heads, d_model, d_proj), dtype=jnp.float32) * 0.1
    # MLP weights, pre-transposed: (d_model, hidden) and (hidden, d_model)
    w1 = jax.random.normal(k1, (d_model, hidden), dtype=jnp.float32) * 0.1
    w2 = jax.random.normal(k2, (hidden, d_model), dtype=jnp.float32) * 0.1

    out = transformer_block(x, wq, wk, wv, w1, w2)
    jax.block_until_ready(out)

    ref = transformer_block_ref(x, wq, wk, wv, w1, w2)
    assert out.shape == (B, S, d_model)
    # bf16 compute with f32 accumulation -> loose tolerance vs. f32 reference.
    assert jnp.allclose(out, ref, atol=5e-2, rtol=5e-2), "mismatch vs reference"

    print("KERNEL_OK")
</pallas_src>

<mosaic_0001>
module attributes {stable_mosaic.version = 11 : i64} {
  func.func @_transformer_block_kernel(%arg0: i32, %arg1: i32, %arg2: memref<1x8x32xbf16, #tpu.memory_space<vmem>>, %arg3: memref<1x8x32xbf16, #tpu.memory_space<vmem>>, %arg4: memref<32x32xbf16, #tpu.memory_space<vmem>>, %arg5: memref<32x32xbf16, #tpu.memory_space<vmem>>, %arg6: memref<32x32xbf16, #tpu.memory_space<vmem>>, %arg7: memref<32x64xbf16, #tpu.memory_space<vmem>>, %arg8: memref<64x32xbf16, #tpu.memory_space<vmem>>, %arg9: memref<1x8x32xf32, #tpu.memory_space<vmem>>, %arg10: memref<8x32xf32, #tpu.memory_space<vmem>>) attributes {dimension_semantics = [#tpu.dimension_semantics<parallel>, #tpu.dimension_semantics<parallel>], iteration_bounds = array<i64: 2, 1>, scalar_prefetch = 0 : i64, scratch_operands = 1 : i64, tpu.core_type = #tpu.core_type<tc>, window_params = [{transform_indices = @transform_0, window_bounds = array<i64: 1, 8, 32>}, {transform_indices = @transform_1, window_bounds = array<i64: 1, 8, 32>}, {pipeline_mode = #tpu.pipeline_mode<synchronous>, transform_indices = @transform_2, window_bounds = array<i64: 32, 32>}, {pipeline_mode = #tpu.pipeline_mode<synchronous>, transform_indices = @transform_3, window_bounds = array<i64: 32, 32>}, {pipeline_mode = #tpu.pipeline_mode<synchronous>, transform_indices = @transform_4, window_bounds = array<i64: 32, 32>}, {pipeline_mode = #tpu.pipeline_mode<synchronous>, transform_indices = @transform_5, window_bounds = array<i64: 32, 64>}, {pipeline_mode = #tpu.pipeline_mode<synchronous>, transform_indices = @transform_6, window_bounds = array<i64: 64, 32>}, {transform_indices = @transform_7, window_bounds = array<i64: 1, 8, 32>}]} {
    %c0 = arith.constant 0 : index
    %c0_0 = arith.constant 0 : index
    %c0_1 = arith.constant 0 : index
    %0 = vector.load %arg2[%c0, %c0_0, %c0_1] : memref<1x8x32xbf16, #tpu.memory_space<vmem>>, vector<1x8x32xbf16>
    %1 = vector.shape_cast %0 : vector<1x8x32xbf16> to vector<8x32xbf16>
    %c0_2 = arith.constant 0 : index
    %c0_3 = arith.constant 0 : index
    %c0_4 = arith.constant 0 : index
    %2 = vector.load %arg3[%c0_2, %c0_3, %c0_4] : memref<1x8x32xbf16, #tpu.memory_space<vmem>>, vector<1x8x32xbf16>
    %3 = vector.shape_cast %2 : vector<1x8x32xbf16> to vector<8x32xbf16>
    %c0_5 = arith.constant 0 : index
    %c0_6 = arith.constant 0 : index
    %4 = vector.load %arg4[%c0_5, %c0_6] : memref<32x32xbf16, #tpu.memory_space<vmem>>, vector<32x32xbf16>
    %cst = arith.constant dense<0.000000e+00> : vector<8x32xf32>
    %5 = tpu.matmul %1, %4, %cst {dimension_numbers = #tpu.dot_dimension_numbers<[1], [0], [0], [1], [0, 0, 1, 1], [], []>} : vector<8x32xbf16>, vector<32x32xbf16>, vector<8x32xf32> -> vector<8x32xf32>
    %c0_7 = arith.constant 0 : index
    %c0_8 = arith.constant 0 : index
    %6 = vector.load %arg5[%c0_7, %c0_8] : memref<32x32xbf16, #tpu.memory_space<vmem>>, vector<32x32xbf16>
    %cst_9 = arith.constant dense<0.000000e+00> : vector<8x32xf32>
    %7 = tpu.matmul %3, %6, %cst_9 {dimension_numbers = #tpu.dot_dimension_numbers<[1], [0], [0], [1], [0, 0, 1, 1], [], []>} : vector<8x32xbf16>, vector<32x32xbf16>, vector<8x32xf32> -> vector<8x32xf32>
    %c0_10 = arith.constant 0 : index
    %c0_11 = arith.constant 0 : index
    %8 = vector.load %arg6[%c0_10, %c0_11] : memref<32x32xbf16, #tpu.memory_space<vmem>>, vector<32x32xbf16>
    %cst_12 = arith.constant dense<0.000000e+00> : vector<8x32xf32>
    %9 = tpu.matmul %3, %8, %cst_12 {dimension_numbers = #tpu.dot_dimension_numbers<[1], [0], [0], [1], [0, 0, 1, 1], [], []>} : vector<8x32xbf16>, vector<32x32xbf16>, vector<8x32xf32> -> vector<8x32xf32>
    %c8_i32 = arith.constant 8 : i32
    %10 = arith.muli %arg1, %c8_i32 : i32
    %11 = tpu.iota {dimensions = array<i32: 0>} : vector<8x8xi32>
    %12 = vector.broadcast %10 : i32 to vector<8x8xi32>
    %13 = arith.addi %12, %11 : vector<8x8xi32>
    %14 = tpu.iota {dimensions = array<i32: 1>} : vector<8x8xi32>
    %15 = arith.cmpi sle, %14, %13 : vector<8x8xi32>
    %cst_13 = arith.constant 0.353553385 : f32
    %16 = vector.broadcast %cst_13 : f32 to vector<8x32xf32>
    %17 = arith.mulf %5, %16 : vector<8x32xf32>
    %18 = arith.truncf %17 : vector<8x32xf32> to vector<8x32xbf16>
    %19 = arith.truncf %7 : vector<8x32xf32> to vector<8x32xbf16>
    %20 = arith.truncf %9 : vector<8x32xf32> to vector<8x32xbf16>
    %21 = vector.extract_strided_slice %18 {offsets = [0, 0], sizes = [8, 8], strides = [1, 1]} : vector<8x32xbf16> to vector<8x8xbf16>
    %22 = vector.extract_strided_slice %19 {offsets = [0, 0], sizes = [8, 8], strides = [1, 1]} : vector<8x32xbf16> to vector<8x8xbf16>
    %23 = vector.extract_strided_slice %20 {offsets = [0, 0], sizes = [8, 8], strides = [1, 1]} : vector<8x32xbf16> to vector<8x8xbf16>
    %cst_14 = arith.constant dense<0.000000e+00> : vector<8x8xf32>
    %24 = tpu.matmul %21, %22, %cst_14 {dimension_numbers = #tpu.dot_dimension_numbers<[1], [1], [0], [0], [0, 0, 1, 0], [], []>} : vector<8x8xbf16>, vector<8x8xbf16>, vector<8x8xf32> -> vector<8x8xf32>
    %cst_15 = arith.constant -1.000000e+30 : f32
    %25 = vector.broadcast %cst_15 : f32 to vector<8x8xf32>
    %26 = arith.select %15, %24, %25 : vector<8x8xi1>, vector<8x8xf32>
    %cst_16 = arith.constant dense<0xFF800000> : vector<8xf32>
    %27 = vector.multi_reduction <maximumf>, %26, %cst_16 [1] : vector<8x8xf32> to vector<8xf32>
    %28 = vector.shape_cast %27 : vector<8xf32> to vector<8x1xf32>
    %29 = vector.broadcast %28 : vector<8x1xf32> to vector<8x8xf32>
    %30 = arith.subf %26, %29 : vector<8x8xf32>
    %31 = math.exp %30 : vector<8x8xf32>
    %cst_17 = arith.constant dense<0.000000e+00> : vector<8xf32>
    %32 = vector.multi_reduction <add>, %31, %cst_17 [1] : vector<8x8xf32> to vector<8xf32>
    %33 = vector.shape_cast %32 : vector<8xf32> to vector<8x1xf32>
    %34 = tpu.reciprocal %33 {approx = true} : vector<8x1xf32> -> vector<8x1xf32>
    %35 = vector.broadcast %34 : vector<8x1xf32> to vector<8x8xf32>
    %36 = arith.mulf %31, %35 : vector<8x8xf32>
    %37 = arith.truncf %36 : vector<8x8xf32> to vector<8x8xbf16>
    %cst_18 = arith.constant dense<0.000000e+00> : vector<8x8xf32>
    %38 = tpu.matmul %37, %23, %cst_18 {dimension_numbers = #tpu.dot_dimension_numbers<[1], [0], [0], [1], [0, 0, 1, 1], [], []>} : vector<8x8xbf16>, vector<8x8xbf16>, vector<8x8xf32> -> vector<8x8xf32>
    %c0_19 = arith.constant 0 : index
    %c0_20 = arith.constant 0 : index
    %39 = vector.load %arg10[%c0_19, %c0_20] : memref<8x32xf32, #tpu.memory_space<vmem>>, vector<8x8xf32>
    tpu.vector_store %arg10[%c0_19, %c0_20], %38 {strides = array<i32>} : memref<8x32xf32, #tpu.memory_space<vmem>>, vector<8x8xf32>,
    %40 = vector.extract_strided_slice %18 {offsets = [0, 8], sizes = [8, 8], strides = [1, 1]} : vector<8x32xbf16> to vector<8x8xbf16>
    %41 = vector.extract_strided_slice %19 {offsets = [0, 8], sizes = [8, 8], strides = [1, 1]} : vector<8x32xbf16> to vector<8x8xbf16>
    %42 = vector.extract_strided_slice %20 {offsets = [0, 8], sizes = [8, 8], strides = [1, 1]} : vector<8x32xbf16> to vector<8x8xbf16>
    %cst_21 = arith.constant dense<0.000000e+00> : vector<8x8xf32>
    %43 = tpu.matmul %40, %41, %cst_21 {dimension_numbers = #tpu.dot_dimension_numbers<[1], [1], [0], [0], [0, 0, 1, 0], [], []>} : vector<8x8xbf16>, vector<8x8xbf16>, vector<8x8xf32> -> vector<8x8xf32>
    %cst_22 = arith.constant -1.000000e+30 : f32
    %44 = vector.broadcast %cst_22 : f32 to vector<8x8xf32>
    %45 = arith.select %15, %43, %44 : vector<8x8xi1>, vector<8x8xf32>
    %cst_23 = arith.constant dense<0xFF800000> : vector<8xf32>
    %46 = vector.multi_reduction <maximumf>, %45, %cst_23 [1] : vector<8x8xf32> to vector<8xf32>
    %47 = vector.shape_cast %46 : vector<8xf32> to vector<8x1xf32>
    %48 = vector.broadcast %47 : vector<8x1xf32> to vector<8x8xf32>
    %49 = arith.subf %45, %48 : vector<8x8xf32>
    %50 = math.exp %49 : vector<8x8xf32>
    %cst_24 = arith.constant dense<0.000000e+00> : vector<8xf32>
    %51 = vector.multi_reduction <add>, %50, %cst_24 [1] : vector<8x8xf32> to vector<8xf32>
    %52 = vector.shape_cast %51 : vector<8xf32> to vector<8x1xf32>
    %53 = tpu.reciprocal %52 {approx = true} : vector<8x1xf32> -> vector<8x1xf32>
    %54 = vector.broadcast %53 : vector<8x1xf32> to vector<8x8xf32>
    %55 = arith.mulf %50, %54 : vector<8x8xf32>
    %56 = arith.truncf %55 : vector<8x8xf32> to vector<8x8xbf16>
    %cst_25 = arith.constant dense<0.000000e+00> : vector<8x8xf32>
    %57 = tpu.matmul %56, %42, %cst_25 {dimension_numbers = #tpu.dot_dimension_numbers<[1], [0], [0], [1], [0, 0, 1, 1], [], []>} : vector<8x8xbf16>, vector<8x8xbf16>, vector<8x8xf32> -> vector<8x8xf32>
    %c0_26 = arith.constant 0 : index
    %c8 = arith.constant 8 : index
    %58 = vector.load %arg10[%c0_26, %c8] : memref<8x32xf32, #tpu.memory_space<vmem>>, vector<8x8xf32>
    tpu.vector_store %arg10[%c0_26, %c8], %57 {strides = array<i32>} : memref<8x32xf32, #tpu.memory_space<vmem>>, vector<8x8xf32>,
    %59 = vector.extract_strided_slice %18 {offsets = [0, 16], sizes = [8, 8], strides = [1, 1]} : vector<8x32xbf16> to vector<8x8xbf16>
    %60 = vector.extract_strided_slice %19 {offsets = [0, 16], sizes = [8, 8], strides = [1, 1]} : vector<8x32xbf16> to vector<8x8xbf16>
    %61 = vector.extract_strided_slice %20 {offsets = [0, 16], sizes = [8, 8], strides = [1, 1]} : vector<8x32xbf16> to vector<8x8xbf16>
    %cst_27 = arith.constant dense<0.000000e+00> : vector<8x8xf32>
    %62 = tpu.matmul %59, %60, %cst_27 {dimension_numbers = #tpu.dot_dimension_numbers<[1], [1], [0], [0], [0, 0, 1, 0], [], []>} : vector<8x8xbf16>, vector<8x8xbf16>, vector<8x8xf32> -> vector<8x8xf32>
    %cst_28 = arith.constant -1.000000e+30 : f32
    %63 = vector.broadcast %cst_28 : f32 to vector<8x8xf32>
    %64 = arith.select %15, %62, %63 : vector<8x8xi1>, vector<8x8xf32>
    %cst_29 = arith.constant dense<0xFF800000> : vector<8xf32>
    %65 = vector.multi_reduction <maximumf>, %64, %cst_29 [1] : vector<8x8xf32> to vector<8xf32>
    %66 = vector.shape_cast %65 : vector<8xf32> to vector<8x1xf32>
    %67 = vector.broadcast %66 : vector<8x1xf32> to vector<8x8xf32>
    %68 = arith.subf %64, %67 : vector<8x8xf32>
    %69 = math.exp %68 : vector<8x8xf32>
    %cst_30 = arith.constant dense<0.000000e+00> : vector<8xf32>
    %70 = vector.multi_reduction <add>, %69, %cst_30 [1] : vector<8x8xf32> to vector<8xf32>
    %71 = vector.shape_cast %70 : vector<8xf32> to vector<8x1xf32>
    %72 = tpu.reciprocal %71 {approx = true} : vector<8x1xf32> -> vector<8x1xf32>
    %73 = vector.broadcast %72 : vector<8x1xf32> to vector<8x8xf32>
    %74 = arith.mulf %69, %73 : vector<8x8xf32>
    %75 = arith.truncf %74 : vector<8x8xf32> to vector<8x8xbf16>
    %cst_31 = arith.constant dense<0.000000e+00> : vector<8x8xf32>
    %76 = tpu.matmul %75, %61, %cst_31 {dimension_numbers = #tpu.dot_dimension_numbers<[1], [0], [0], [1], [0, 0, 1, 1], [], []>} : vector<8x8xbf16>, vector<8x8xbf16>, vector<8x8xf32> -> vector<8x8xf32>
    %c0_32 = arith.constant 0 : index
    %c16 = arith.constant 16 : index
    %77 = vector.load %arg10[%c0_32, %c16] : memref<8x32xf32, #tpu.memory_space<vmem>>, vector<8x8xf32>
    tpu.vector_store %arg10[%c0_32, %c16], %76 {strides = array<i32>} : memref<8x32xf32, #tpu.memory_space<vmem>>, vector<8x8xf32>,
    %78 = vector.extract_strided_slice %18 {offsets = [0, 24], sizes = [8, 8], strides = [1, 1]} : vector<8x32xbf16> to vector<8x8xbf16>
    %79 = vector.extract_strided_slice %19 {offsets = [0, 24], sizes = [8, 8], strides = [1, 1]} : vector<8x32xbf16> to vector<8x8xbf16>
    %80 = vector.extract_strided_slice %20 {offsets = [0, 24], sizes = [8, 8], strides = [1, 1]} : vector<8x32xbf16> to vector<8x8xbf16>
    %cst_33 = arith.constant dense<0.000000e+00> : vector<8x8xf32>
    %81 = tpu.matmul %78, %79, %cst_33 {dimension_numbers = #tpu.dot_dimension_numbers<[1], [1], [0], [0], [0, 0, 1, 0], [], []>} : vector<8x8xbf16>, vector<8x8xbf16>, vector<8x8xf32> -> vector<8x8xf32>
    %cst_34 = arith.constant -1.000000e+30 : f32
    %82 = vector.broadcast %cst_34 : f32 to vector<8x8xf32>
    %83 = arith.select %15, %81, %82 : vector<8x8xi1>, vector<8x8xf32>
    %cst_35 = arith.constant dense<0xFF800000> : vector<8xf32>
    %84 = vector.multi_reduction <maximumf>, %83, %cst_35 [1] : vector<8x8xf32> to vector<8xf32>
    %85 = vector.shape_cast %84 : vector<8xf32> to vector<8x1xf32>
    %86 = vector.broadcast %85 : vector<8x1xf32> to vector<8x8xf32>
    %87 = arith.subf %83, %86 : vector<8x8xf32>
    %88 = math.exp %87 : vector<8x8xf32>
    %cst_36 = arith.constant dense<0.000000e+00> : vector<8xf32>
    %89 = vector.multi_reduction <add>, %88, %cst_36 [1] : vector<8x8xf32> to vector<8xf32>
    %90 = vector.shape_cast %89 : vector<8xf32> to vector<8x1xf32>
    %91 = tpu.reciprocal %90 {approx = true} : vector<8x1xf32> -> vector<8x1xf32>
    %92 = vector.broadcast %91 : vector<8x1xf32> to vector<8x8xf32>
    %93 = arith.mulf %88, %92 : vector<8x8xf32>
    %94 = arith.truncf %93 : vector<8x8xf32> to vector<8x8xbf16>
    %cst_37 = arith.constant dense<0.000000e+00> : vector<8x8xf32>
    %95 = tpu.matmul %94, %80, %cst_37 {dimension_numbers = #tpu.dot_dimension_numbers<[1], [0], [0], [1], [0, 0, 1, 1], [], []>} : vector<8x8xbf16>, vector<8x8xbf16>, vector<8x8xf32> -> vector<8x8xf32>
    %c0_38 = arith.constant 0 : index
    %c24 = arith.constant 24 : index
    %96 = vector.load %arg10[%c0_38, %c24] : memref<8x32xf32, #tpu.memory_space<vmem>>, vector<8x8xf32>
    tpu.vector_store %arg10[%c0_38, %c24], %95 {strides = array<i32>} : memref<8x32xf32, #tpu.memory_space<vmem>>, vector<8x8xf32>,
    %97 = arith.extf %1 : vector<8x32xbf16> to vector<8x32xf32>
    %c0_39 = arith.constant 0 : index
    %c0_40 = arith.constant 0 : index
    %98 = vector.load %arg10[%c0_39, %c0_40] : memref<8x32xf32, #tpu.memory_space<vmem>>, vector<8x32xf32>
    %99 = arith.addf %97, %98 : vector<8x32xf32>
    %100 = arith.truncf %99 : vector<8x32xf32> to vector<8x32xbf16>
    %c0_41 = arith.constant 0 : index
    %c0_42 = arith.constant 0 : index
    %101 = vector.load %arg7[%c0_41, %c0_42] : memref<32x64xbf16, #tpu.memory_space<vmem>>, vector<32x64xbf16>
    %cst_43 = arith.constant dense<0.000000e+00> : vector<8x64xf32>
    %102 = tpu.matmul %100, %101, %cst_43 {dimension_numbers = #tpu.dot_dimension_numbers<[1], [0], [0], [1], [0, 0, 1, 1], [], []>} : vector<8x32xbf16>, vector<32x64xbf16>, vector<8x64xf32> -> vector<8x64xf32>
    %cst_44 = arith.constant 0.000000e+00 : f32
    %103 = vector.broadcast %cst_44 : f32 to vector<8x64xf32>
    %104 = arith.maximumf %102, %103 : vector<8x64xf32>
    %105 = arith.truncf %104 : vector<8x64xf32> to vector<8x64xbf16>
    %c0_45 = arith.constant 0 : index
    %c0_46 = arith.constant 0 : index
    %106 = vector.load %arg8[%c0_45, %c0_46] : memref<64x32xbf16, #tpu.memory_space<vmem>>, vector<64x32xbf16>
    %cst_47 = arith.constant dense<0.000000e+00> : vector<8x32xf32>
    %107 = tpu.matmul %105, %106, %cst_47 {dimension_numbers = #tpu.dot_dimension_numbers<[1], [0], [0], [1], [0, 0, 1, 1], [], []>} : vector<8x64xbf16>, vector<64x32xbf16>, vector<8x32xf32> -> vector<8x32xf32>
    %cst_48 = arith.constant 0.000000e+00 : f32
    %108 = vector.broadcast %cst_48 : f32 to vector<8x32xf32>
    %109 = arith.maximumf %107, %108 : vector<8x32xf32>
    %110 = arith.addf %97, %109 : vector<8x32xf32>
    %c0_49 = arith.constant 0 : index
    %c0_50 = arith.constant 0 : index
    %c0_51 = arith.constant 0 : index
    %111 = vector.load %arg9[%c0_49, %c0_50, %c0_51] : memref<1x8x32xf32, #tpu.memory_space<vmem>>, vector<1x8x32xf32>
    %112 = vector.shape_cast %111 : vector<1x8x32xf32> to vector<8x32xf32>
    %113 = vector.shape_cast %110 : vector<8x32xf32> to vector<1x8x32xf32>
    tpu.vector_store %arg9[%c0_49, %c0_50, %c0_51], %113 {strides = array<i32>} : memref<1x8x32xf32, #tpu.memory_space<vmem>>, vector<1x8x32xf32>,
    return
  }
  func.func @transform_0(%arg0: i32, %arg1: i32) -> (i32, i32, i32) {
    %c0_i32 = arith.constant 0 : i32
    %c0_i32_0 = arith.constant 0 : i32
    return %arg0, %arg1, %c0_i32 : i32, i32, i32
  }
  func.func @transform_1(%arg0: i32, %arg1: i32) -> (i32, i32, i32) {
    %c0_i32 = arith.constant 0 : i32
    %c0_i32_0 = arith.constant 0 : i32
    %c0_i32_1 = arith.constant 0 : i32
    return %arg0, %c0_i32, %c0_i32_0 : i32, i32, i32
  }
  func.func @transform_2(%arg0: i32, %arg1: i32) -> (i32, i32) {
    %c0_i32 = arith.constant 0 : i32
    %c0_i32_0 = arith.constant 0 : i32
    %c0_i32_1 = arith.constant 0 : i32
    return %c0_i32, %c0_i32_0 : i32, i32
  }
  func.func @transform_3(%arg0: i32, %arg1: i32) -> (i32, i32) {
    %c0_i32 = arith.constant 0 : i32
    %c0_i32_0 = arith.constant 0 : i32
    %c0_i32_1 = arith.constant 0 : i32
    return %c0_i32, %c0_i32_0 : i32, i32
  }
  func.func @transform_4(%arg0: i32, %arg1: i32) -> (i32, i32) {
    %c0_i32 = arith.constant 0 : i32
    %c0_i32_0 = arith.constant 0 : i32
    %c0_i32_1 = arith.constant 0 : i32
    return %c0_i32, %c0_i32_0 : i32, i32
  }
  func.func @transform_5(%arg0: i32, %arg1: i32) -> (i32, i32) {
    %c0_i32 = arith.constant 0 : i32
    %c0_i32_0 = arith.constant 0 : i32
    %c0_i32_1 = arith.constant 0 : i32
    return %c0_i32, %c0_i32_0 : i32, i32
  }
  func.func @transform_6(%arg0: i32, %arg1: i32) -> (i32, i32) {
    %c0_i32 = arith.constant 0 : i32
    %c0_i32_0 = arith.constant 0 : i32
    %c0_i32_1 = arith.constant 0 : i32
    return %c0_i32, %c0_i32_0 : i32, i32
  }
  func.func @transform_7(%arg0: i32, %arg1: i32) -> (i32, i32, i32) {
    %c0_i32 = arith.constant 0 : i32
    %c0_i32_0 = arith.constant 0 : i32
    return %arg0, %arg1, %c0_i32 : i32, i32, i32
  }
}

</mosaic_0001>

<llo_original>
// kernel: tpu_custom_call.1
$region0: #{tpu_custom_call.1}
  #allocation0 [shape = 'u32[]', space=smem, size = 0x4, offset = 0x4, fixed_abs, tag = 'smem constant byte address 0x4 - core index']
  #allocation1 [shape = 'u32[72,128]{1,0:T(1,128)}', space=vmem, size = 0x9000, scoped, tag = 'internal scratch']
  #allocation2 [shape = 'f32[8,32]{1,0:T(8,128)}', space=vmem, size = 0x1000, scoped, tag = 'scratch operand']
  %s0 = inlined_call_operand.hbm [shape: bf16[2,8,32], index: 0, kind: input, shape index: {}]
  %s1 = inlined_call_operand.hbm [shape: bf16[2,8,32], index: 1, kind: input, shape index: {}]
  %s2 = inlined_call_operand.vmem [shape: bf16[32,32], index: 2, kind: input, shape index: {}]
  %s3 = inlined_call_operand.vmem [shape: bf16[32,32], index: 3, kind: input, shape index: {}]
  %s4 = inlined_call_operand.vmem [shape: bf16[32,32], index: 4, kind: input, shape index: {}]
  %s5 = inlined_call_operand.hbm [shape: bf16[32,64], index: 5, kind: input, shape index: {}]
  %s6 = inlined_call_operand.vmem [shape: bf16[64,32], index: 6, kind: input, shape index: {}]
  %s7 = inlined_call_operand.hbm [shape: f32[2,8,32], index: 7, kind: output, shape index: {}]
  %s8 = sld [smem:[#allocation0]]
  $region73: #{tpu_custom_call.1} parent=0
    _
  %s10 = ssub.s32 1, %s8
  %s11 = scalar_select 0, %s10, %s8
  $region1: #{tpu_custom_call.1} parent=0
    #allocation3 [shape = 'u8[4096]{0}', space=vmem, size = 0x1000, scoped, tag = 'input window, operand 0']
    #allocation4 [shape = 's32[2]{0}', space=sflag, size = 0x8, scoped, tag = 'scoped memory for tpu_custom_call.1']
    #allocation5 [shape = 's32[2]{0}', space=sflag, size = 0x8, scoped, tag = 'scoped memory for tpu_custom_call.1']
    #allocation6 [shape = 'u8[4096]{0}', space=vmem, size = 0x1000, scoped, tag = 'input window, operand 1']
    #allocation7 [shape = 's32[2]{0}', space=sflag, size = 0x8, scoped, tag = 'scoped memory for tpu_custom_call.1']
    #allocation8 [shape = 'u8[8192]{0}', space=vmem, size = 0x2000, scoped, tag = 'input window, operand 5, single buffered']
    #allocation9 [shape = 'u8[8192]{0}', space=vmem, size = 0x2000, scoped, tag = 'output window, operand 0']
    %12 = vsyncpa [#allocation4], 0
    %s13 = scalar_lea.sflag [#allocation4], 1
    %14 = vsyncpa %s13, 0
    %15 = vsyncpa [#allocation7], 0
    %s16 = scalar_lea.sflag [#allocation7], 1
    %17 = vsyncpa %s16, 0
    %18 = vsyncpa [#allocation5], 0
    %s19 = scalar_lea.sflag [#allocation5], 1
    %20 = vsyncpa %s19, 0
    loop: start=0, step=1, limit=4
    $region2: #{tpu_custom_call.1} parent=1 // loop_pre_header
      _
    $region3: #{tpu_custom_call.1} parent=1 // loop_header
      %s22 = sphi 0, %s26
      %p23 = scmp.ge.s32.totalorder %s22, 4
      %s29 = sphi 0, %s41
      %s30 = sphi 0, %s37
      %s31 = sphi 0, %s29
      %s32 = sphi 0, %s30
      %s33 = sphi 0, %s31
      %s34 = sphi 0, %s32
      %s46 = sphi 0, %s48
      %s49 = sphi 0, %s46
      %s50 = sphi 0, %s49
      %s66 = sphi 0, %s50
      %s72 = sphi 0, %s74
      %s75 = sphi 0, %s72
      %s76 = sphi 0, %s75
      %s92 = sphi 0, %s76
      %s96 = sphi 0, %s96
      %s98 = sphi 0, %s96
      %s99 = sphi 0, %s98
      %s113 = sphi 0, %s99
      %s117 = sphi 0, %s117
      %s119 = sphi 0, %s117
      %s120 = sphi 0, %s119
      %s134 = sphi 0, %s120
      %s138 = sphi 0, %s138
      %s140 = sphi 0, %s138
      %s141 = sphi 0, %s140
      %s155 = sphi 0, %s141
      %s159 = sphi 0, %s159
      %s161 = sphi 0, %s159
      %s162 = sphi 0, %s161
      %s176 = sphi 0, %s162
      %s180 = sphi 0, %s180
      %s182 = sphi 0, %s180
      %s183 = sphi 0, %s182
      %s197 = sphi 0, %s183
      %s205 = sphi 0, %s207
      %s208 = sphi 0, %s205
      %s209 = sphi 0, %s208
      %s225 = sphi 0, %s209
    $region4: #{tpu_custom_call.1} parent=1 // loop_header_branch
      %25 = sbr.rel (%p23) target = $region8
    $region5: #{tpu_custom_call.1} parent=1 // loop_body
      %s27 = ssub.s32 %s22, 1
      %s28 = ssub.s32 %s22, 2
      %s35 = sadd.s32 1, %s30
      %p36 = scmp.ge.s32.totalorder %s35, 1
      %s37 = scalar_select %p36, 0, %s35
      %s38 = sadd.s32 1, %s29
      %s39 = scalar_select %p36, %s38, %s29
      %p40 = scmp.ge.s32.totalorder %s39, 2
      %s41 = scalar_select %p40, 0, %s39
      %s42 = ssub.s32 %s29, %s41
      %s43 = ssub.s32 %s30, %s37
      %s44 = sor.u32 %s42, %s43
      %p45 = scmp.eq.s32.totalorder %s44, 0
      %s47 = sadd.s32 %s46, 1
      %s48 = scalar_select %p45, %s46, %s47
      %p51 = pneg %p45
      %p52 = scmp.eq.s32.totalorder %s22, 1
      %p53 = por %p51, %p52
      %p54 = scmp.ne.s32.totalorder %s46, %s49
      %p55 = scmp.eq.s32.totalorder %s22, 0
      %p56 = por %p54, %p55
      %p57 = scmp.ne.s32.totalorder %s46, %s49
      %p58 = scmp.eq.s32.totalorder %s27, 1
      %p59 = por %p57, %p58
      %p60 = scmp.ne.s32.totalorder %s49, %s50
      %p61 = scmp.eq.s32.totalorder %s27, 0
      %p62 = por %p60, %p61
      %p63 = scmp.ne.s32.totalorder %s49, %s50
      %p64 = scmp.eq.s32.totalorder %s28, 1
      %p65 = por %p63, %p64
      %p67 = scmp.ne.s32.totalorder %s50, %s66
      %p68 = scmp.eq.s32.totalorder %s28, 0
      %p69 = por %p67, %p68
      %s70 = ssub.s32 %s29, %s41
      %p71 = scmp.eq.s32.totalorder %s70, 0
      %s73 = sadd.s32 %s72, 1
      %s74 = scalar_select %p71, %s72, %s73
      %p77 = pneg %p71
      %p78 = scmp.eq.s32.totalorder %s22, 1
      %p79 = por %p77, %p78
      %p80 = scmp.ne.s32.totalorder %s72, %s75
      %p81 = scmp.eq.s32.totalorder %s22, 0
      %p82 = por %p80, %p81
      %p83 = scmp.ne.s32.totalorder %s72, %s75
      %p84 = scmp.eq.s32.totalorder %s27, 1
      %p85 = por %p83, %p84
      %p86 = scmp.ne.s32.totalorder %s75, %s76
      %p87 = scmp.eq.s32.totalorder %s27, 0
      %p88 = por %p86, %p87
      %p89 = scmp.ne.s32.totalorder %s75, %s76
      %p90 = scmp.eq.s32.totalorder %s28, 1
      %p91 = por %p89, %p90
      %p93 = scmp.ne.s32.totalorder %s76, %s92
      %p94 = scmp.eq.s32.totalorder %s28, 0
      %p95 = por %p93, %p94
      %s97 = sadd.s32 %s96, 1
      %p100 = scmp.eq.s32.totalorder %s22, 1
      %p101 = scmp.ne.s32.totalorder %s96, %s98
      %p102 = scmp.eq.s32.totalorder %s22, 0
      %p103 = por %p101, %p102
      %p104 = scmp.ne.s32.totalorder %s96, %s98
      %p105 = scmp.eq.s32.totalorder %s27, 1
      %p106 = por %p104, %p105
      %p107 = scmp.ne.s32.totalorder %s98, %s99
      %p108 = scmp.eq.s32.totalorder %s27, 0
      %p109 = por %p107, %p108
      %p110 = scmp.ne.s32.totalorder %s98, %s99
      %p111 = scmp.eq.s32.totalorder %s28, 1
      %p112 = por %p110, %p111
      %p114 = scmp.ne.s32.totalorder %s99, %s113
      %p115 = scmp.eq.s32.totalorder %s28, 0
      %p116 = por %p114, %p115
      %s118 = sadd.s32 %s117, 1
      %p121 = scmp.eq.s32.totalorder %s22, 1
      %p122 = scmp.ne.s32.totalorder %s117, %s119
      %p123 = scmp.eq.s32.totalorder %s22, 0
      %p124 = por %p122, %p123
      %p125 = scmp.ne.s32.totalorder %s117, %s119
      %p126 = scmp.eq.s32.totalorder %s27, 1
      %p127 = por %p125, %p126
      %p128 = scmp.ne.s32.totalorder %s119, %s120
      %p129 = scmp.eq.s32.totalorder %s27, 0
      %p130 = por %p128, %p129
      %p131 = scmp.ne.s32.totalorder %s119, %s120
      %p132 = scmp.eq.s32.totalorder %s28, 1
      %p133 = por %p131, %p132
      %p135 = scmp.ne.s32.totalorder %s120, %s134
      %p136 = scmp.eq.s32.totalorder %s28, 0
      %p137 = por %p135, %p136
      %s139 = sadd.s32 %s138, 1
      %p142 = scmp.eq.s32.totalorder %s22, 1
      %p143 = scmp.ne.s32.totalorder %s138, %s140
      %p144 = scmp.eq.s32.totalorder %s22, 0
      %p145 = por %p143, %p144
      %p146 = scmp.ne.s32.totalorder %s138, %s140
      %p147 = scmp.eq.s32.totalorder %s27, 1
      %p148 = por %p146, %p147
      %p149 = scmp.ne.s32.totalorder %s140, %s141
      %p150 = scmp.eq.s32.totalorder %s27, 0
      %p151 = por %p149, %p150
      %p152 = scmp.ne.s32.totalorder %s140, %s141
      %p153 = scmp.eq.s32.totalorder %s28, 1
      %p154 = por %p152, %p153
      %p156 = scmp.ne.s32.totalorder %s141, %s155
      %p157 = scmp.eq.s32.totalorder %s28, 0
      %p158 = por %p156, %p157
      %s160 = sadd.s32 %s159, 1
      %p163 = scmp.eq.s32.totalorder %s22, 1
      %p164 = scmp.ne.s32.totalorder %s159, %s161
      %p165 = scmp.eq.s32.totalorder %s22, 0
      %p166 = por %p164, %p165
      %p167 = scmp.ne.s32.totalorder %s159, %s161
      %p168 = scmp.eq.s32.totalorder %s27, 1
      %p169 = por %p167, %p168
      %p170 = scmp.ne.s32.totalorder %s161, %s162
      %p171 = scmp.eq.s32.totalorder %s27, 0
      %p172 = por %p170, %p171
      %p173 = scmp.ne.s32.totalorder %s161, %s162
      %p174 = scmp.eq.s32.totalorder %s28, 1
      %p175 = por %p173, %p174
      %p177 = scmp.ne.s32.totalorder %s162, %s176
      %p178 = scmp.eq.s32.totalorder %s28, 0
      %p179 = por %p177, %p178
      %s181 = sadd.s32 %s180, 1
      %p184 = scmp.eq.s32.totalorder %s22, 1
      %p185 = scmp.ne.s32.totalorder %s180, %s182
      %p186 = scmp.eq.s32.totalorder %s22, 0
      %p187 = por %p185, %p186
      %p188 = scmp.ne.s32.totalorder %s180, %s182
      %p189 = scmp.eq.s32.totalorder %s27, 1
      %p190 = por %p188, %p189
      %p191 = scmp.ne.s32.totalorder %s182, %s183
      %p192 = scmp.eq.s32.totalorder %s27, 0
      %p193 = por %p191, %p192
      %p194 = scmp.ne.s32.totalorder %s182, %s183
      %p195 = scmp.eq.s32.totalorder %s28, 1
      %p196 = por %p194, %p195
      %p198 = scmp.ne.s32.totalorder %s183, %s197
      %p199 = scmp.eq.s32.totalorder %s28, 0
      %p200 = por %p198, %p199
      %s201 = ssub.s32 %s29, %s41
      %s202 = ssub.s32 %s30, %s37
      %s203 = sor.u32 %s201, %s202
      %p204 = scmp.eq.s32.totalorder %s203, 0
      %s206 = sadd.s32 %s205, 1
      %s207 = scalar_select %p204, %s205, %s206
      %p210 = pneg %p204
      %p211 = scmp.eq.s32.totalorder %s22, 1
      %p212 = por %p210, %p211
      %p213 = scmp.ne.s32.totalorder %s205, %s208
      %p214 = scmp.eq.s32.totalorder %s22, 0
      %p215 = por %p213, %p214
      %p216 = scmp.ne.s32.totalorder %s205, %s208
      %p217 = scmp.eq.s32.totalorder %s27, 1
      %p218 = por %p216, %p217
      %p219 = scmp.ne.s32.totalorder %s208, %s209
      %p220 = scmp.eq.s32.totalorder %s27, 0
      %p221 = por %p219, %p220
      %p222 = scmp.ne.s32.totalorder %s208, %s209
      %p223 = scmp.eq.s32.totalorder %s28, 1
      %p224 = por %p222, %p223
      %p226 = scmp.ne.s32.totalorder %s209, %s225
      %p227 = scmp.eq.s32.totalorder %s28, 0
      %p228 = por %p226, %p227
      %p229 = scmp.le.s32.totalorder 1, %s22
      %p230 = scmp.lt.s32.totalorder %s22, 3
      %p231 = pnand %p229, %p230
      %p232 = pneg %p231
      // Predicated region
      $region9: #{tpu_custom_call.1} parent=5 // pred_check
        _
      $region10: #{tpu_custom_call.1} parent=5 // pred_check_branch
        %234 = sbr.rel (%p231) target = $region12
      $region11: #{tpu_custom_call.1} parent=5 // pred_region
        %s235 = ssub.s32 %s22, 1
        // Predicated region
        $region13: #{tpu_custom_call.1} parent=11 // pred_check
          %p236 = pneg %p109
        $region14: #{tpu_custom_call.1} parent=11 // pred_check_branch
          %238 = sbr.rel (%p236) target = $region16
        $region15: #{tpu_custom_call.1} parent=11 // pred_region
          _
        $region16: #{tpu_custom_call.1} parent=11 // pred_fallthru
          _
        // Predicated region
        $region17: #{tpu_custom_call.1} parent=11 // pred_check
          %p239 = pneg %p130
        $region18: #{tpu_custom_call.1} parent=11 // pred_check_branch
          %241 = sbr.rel (%p239) target = $region20
        $region19: #{tpu_custom_call.1} parent=11 // pred_region
          _
        $region20: #{tpu_custom_call.1} parent=11 // pred_fallthru
          _
        // Predicated region
        $region21: #{tpu_custom_call.1} parent=11 // pred_check
          %p242 = pneg %p151
        $region22: #{tpu_custom_call.1} parent=11 // pred_check_branch
          %244 = sbr.rel (%p242) target = $region24
        $region23: #{tpu_custom_call.1} parent=11 // pred_region
          _
        $region24: #{tpu_custom_call.1} parent=11 // pred_fallthru
          _
        // Predicated region
        $region25: #{tpu_custom_call.1} parent=11 // pred_check
          %p245 = pneg %p172
        $region26: #{tpu_custom_call.1} parent=11 // pred_check_branch
          %247 = sbr.rel (%p245) target = $region28
        $region27: #{tpu_custom_call.1} parent=11 // pred_region
          %249 = vsyncadd [#allocation7], 0
          %s250 = sshll.u32 %s5, 4
          %s251 = int_to_ptr.hbm [resolvable:$true] %s250
          %s252 = sshll.u32 [#allocation8], 4
          %s253 = int_to_ptr.vmem [resolvable:$true] %s252
          %258 = dma.hbm_to_vmem [thread:$0]  %s251, 256, %s253, [#allocation7], 64, 64, 4
        $region28: #{tpu_custom_call.1} parent=11 // pred_fallthru
          _
        // Predicated region
        $region29: #{tpu_custom_call.1} parent=11 // pred_check
          %p259 = pneg %p193
        $region30: #{tpu_custom_call.1} parent=11 // pred_check_branch
          %261 = sbr.rel (%p259) target = $region32
        $region31: #{tpu_custom_call.1} parent=11 // pred_region
          _
        $region32: #{tpu_custom_call.1} parent=11 // pred_fallthru
          _
      $region12: #{tpu_custom_call.1} parent=5 // pred_fallthru
        _
      %p262 = scmp.lt.s32.totalorder %s22, 2
      // Predicated region
      $region33: #{tpu_custom_call.1} parent=5 // pred_check
        %p263 = pneg %p262
      $region34: #{tpu_custom_call.1} parent=5 // pred_check_branch
        %265 = sbr.rel (%p263) target = $region36
      $region35: #{tpu_custom_call.1} parent=5 // pred_region
        // Predicated region
        $region37: #{tpu_custom_call.1} parent=35 // pred_check
          %p266 = pneg %p56
        $region38: #{tpu_custom_call.1} parent=35 // pred_check_branch
          %268 = sbr.rel (%p266) target = $region40
        $region39: #{tpu_custom_call.1} parent=35 // pred_region
          %s269 = sand.u32 %s46, 1
          %s270 = scalar_lea.sflag [#allocation4], %s269
          %s271 = sand.u32 %s46, 1
          %s272 = smul.addr %s271, 4
          %s273 = scalar_lea.vmem [#allocation3], %s272
          %275 = vsyncadd %s270, 0
          %s276 = sadd.s32 %s30, %s29
          %s277 = smul.addr %s276, 4
          %s278 = scalar_lea.hbm %s0, %s277
          %s280 = sshll.u32 %s278, 4
          %s281 = int_to_ptr.hbm [resolvable:$true] %s280
          %s282 = sshll.u32 %s273, 4
          %s283 = int_to_ptr.vmem [resolvable:$true] %s282
          %285 = dma.hbm_to_vmem [thread:$0]  %s281, 64, %s283, %s270
        $region40: #{tpu_custom_call.1} parent=35 // pred_fallthru
          _
        // Predicated region
        $region41: #{tpu_custom_call.1} parent=35 // pred_check
          %p286 = pneg %p82
        $region42: #{tpu_custom_call.1} parent=35 // pred_check_branch
          %288 = sbr.rel (%p286) target = $region44
        $region43: #{tpu_custom_call.1} parent=35 // pred_region
          %s289 = sand.u32 %s22, 1
          %s290 = scalar_lea.sflag [#allocation7], %s289
          %s291 = sand.u32 %s72, 1
          %s292 = smul.addr %s291, 4
          %s293 = scalar_lea.vmem [#allocation6], %s292
          %295 = vsyncadd %s290, 0
          %s296 = smul.addr %s29, 4
          %s297 = scalar_lea.hbm %s1, %s296
          %s299 = sshll.u32 %s297, 4
          %s300 = int_to_ptr.hbm [resolvable:$true] %s299
          %s301 = sshll.u32 %s293, 4
          %s302 = int_to_ptr.vmem [resolvable:$true] %s301
          %304 = dma.hbm_to_vmem [thread:$0]  %s300, 64, %s302, %s290
        $region44: #{tpu_custom_call.1} parent=35 // pred_fallthru
          _
      $region36: #{tpu_custom_call.1} parent=5 // pred_fallthru
        _
      %p305 = scmp.le.s32.totalorder 1, %s22
      %p306 = scmp.lt.s32.totalorder %s22, 3
      %p307 = pnand %p305, %p306
      %p308 = pneg %p307
      // Predicated region
      $region45: #{tpu_custom_call.1} parent=5 // pred_check
        _
      $region46: #{tpu_custom_call.1} parent=5 // pred_check_branch
        %310 = sbr.rel (%p307) target = $region48
      $region47: #{tpu_custom_call.1} parent=5 // pred_region
        %s311 = ssub.s32 %s22, 1
        %s312 = sand.u32 %s49, 1
        %s313 = scalar_lea.sflag [#allocation4], %s312
        %s314 = sand.u32 %s49, 1
        %s315 = smul.addr %s314, 4
        %s316 = scalar_lea.vmem [#allocation3], %s315
        // Predicated region
        $region49: #{tpu_custom_call.1} parent=47 // pred_check
          %p317 = pneg %p62
        $region50: #{tpu_custom_call.1} parent=47 // pred_check_branch
          %319 = sbr.rel (%p317) target = $region52
        $region51: #{tpu_custom_call.1} parent=47 // pred_region
          %321 = dma.done %s313, 64
        $region52: #{tpu_custom_call.1} parent=47 // pred_fallthru
          _
        %s322 = sand.u32 %s27, 1
        %s323 = scalar_lea.sflag [#allocation7], %s322
        %s324 = sand.u32 %s75, 1
        %s325 = smul.addr %s324, 4
        %s326 = scalar_lea.vmem [#allocation6], %s325
        // Predicated region
        $region53: #{tpu_custom_call.1} parent=47 // pred_check
          %p327 = pneg %p88
        $region54: #{tpu_custom_call.1} parent=47 // pred_check_branch
          %329 = sbr.rel (%p327) target = $region56
        $region55: #{tpu_custom_call.1} parent=47 // pred_region
          %331 = dma.done %s323, 64
        $region56: #{tpu_custom_call.1} parent=47 // pred_fallthru
          _
        // Predicated region
        $region57: #{tpu_custom_call.1} parent=47 // pred_check
          %p332 = pneg %p172
        $region58: #{tpu_custom_call.1} parent=47 // pred_check_branch
          %334 = sbr.rel (%p332) target = $region60
        $region59: #{tpu_custom_call.1} parent=47 // pred_region
          %336 = dma.done [#allocation7], 256
        $region60: #{tpu_custom_call.1} parent=47 // pred_fallthru
          _
        %s337 = sand.u32 %s49, 1
        %s338 = scalar_lea.sflag [#allocation4], %s337
        %s339 = sand.u32 %s49, 1
        %s340 = smul.addr %s339, 4
        %s341 = scalar_lea.vmem [#allocation3], %s340
        %p342 = pneg %p62
        %p343 = pneg %p59
        %s344 = sand.u32 %s27, 1
        %s345 = scalar_lea.sflag [#allocation7], %s344
        %s346 = sand.u32 %s75, 1
        %s347 = smul.addr %s346, 4
        %s348 = scalar_lea.vmem [#allocation6], %s347
        %p349 = pneg %p88
        %p350 = pneg %p85
        %p351 = pneg %p109
        %p352 = pneg %p106
        %p353 = pneg %p130
        %p354 = pneg %p127
        %p355 = pneg %p151
        %p356 = pneg %p148
        %p357 = pneg %p172
        %p358 = pneg %p169
        %p359 = pneg %p193
        %p360 = pneg %p190
        %p361 = pneg %p221
        %p362 = pneg %p218
        %s363 = sand.u32 %s208, 1
        %s364 = scalar_lea.sflag [#allocation5], %s363
        %s365 = sand.u32 %s208, 1
        %s366 = smul.addr %s365, 8
        %s367 = scalar_lea.vmem [#allocation9], %s366
        %v369 = vld [vmem:[%s316] sm:$0xf]
        %v370 = vld [vmem:[%s326] sm:$0xf]
        %v371 = vld [vmem:[%s2] sm:$0xf]
        %v372 = vld [vmem:[%s2 + $0x4] sm:$0xf]
        %v373 = vld [vmem:[%s2 + $0x8] sm:$0xf]
        %v374 = vld [vmem:[%s2 + $0xc] sm:$0xf]
        %v379 = vunpack.c.l.b16 %v371
        %v380 = vunpack.c.l.b16 %v372
        %v381 = vunpack.c.l.b16 %v373
        %v382 = vunpack.c.l.b16 %v374
        %v383 = vpack.c.b16 %v380, %v379
        %v384 = vpack.c.b16 %v382, %v381
        %vm387 = vcmask 261120
        %v389 = vsel %vm387, %v369, 0
        %391 = vmatpush.bf16.msra.mxu0 0
        %392 = vmatpush.bf16.msra.mxu0 0
        %393 = vmatpush.bf16.msra.mxu0 0
        %394 = vmatpush.bf16.msra.mxu0 0
        %395 = vmatpush.bf16.msra.mxu0 0
        %396 = vmatpush.bf16.msra.mxu0 0
        %397 = vmatpush.bf16.msra.mxu0 %v384
        %398 = vmatpush.bf16.msra.mxu0 %v383
        %399 = vmatmul.bf16.gmra.mxu0 %v389
        %v400 = vpop.f32.mrf.mxu0
        %v401 = vadd.f32 0.0, %v400
        %v402 = vpop.f32.mrf.mxu0
        %403 = vdwg.mxu0
        %v404 = vld [vmem:[%s3] sm:$0xf]
        %v405 = vld [vmem:[%s3 + $0x4] sm:$0xf]
        %v406 = vld [vmem:[%s3 + $0x8] sm:$0xf]
        %v407 = vld [vmem:[%s3 + $0xc] sm:$0xf]
        %v412 = vunpack.c.l.b16 %v404
        %v413 = vunpack.c.l.b16 %v405
        %v414 = vunpack.c.l.b16 %v406
        %v415 = vunpack.c.l.b16 %v407
        %v416 = vpack.c.b16 %v413, %v412
        %v417 = vpack.c.b16 %v415, %v414
        %v421 = vsel %vm387, %v370, 0
        %423 = vmatpush.bf16.msra.mxu0 0
        %424 = vmatpush.bf16.msra.mxu0 0
        %425 = vmatpush.bf16.msra.mxu0 0
        %426 = vmatpush.bf16.msra.mxu0 0
        %427 = vmatpush.bf16.msra.mxu0 0
        %428 = vmatpush.bf16.msra.mxu0 0
        %429 = vmatpush.bf16.msra.mxu0 %v417
        %430 = vmatpush.bf16.msra.mxu0 %v416
        %431 = vmatmul.bf16.gmra.mxu0 %v421
        %v432 = vpop.f32.mrf.mxu0
        %v433 = vadd.f32 0.0, %v432
        %v434 = vpop.f32.mrf.mxu0
        %435 = vdwg.mxu0
        %v436 = vld [vmem:[%s4] sm:$0xf]
        %v437 = vld [vmem:[%s4 + $0x4] sm:$0xf]
        %v438 = vld [vmem:[%s4 + $0x8] sm:$0xf]
        %v439 = vld [vmem:[%s4 + $0xc] sm:$0xf]
        %v444 = vunpack.c.l.b16 %v436
        %v445 = vunpack.c.l.b16 %v437
        %v446 = vunpack.c.l.b16 %v438
        %v447 = vunpack.c.l.b16 %v439
        %v448 = vpack.c.b16 %v445, %v444
        %v449 = vpack.c.b16 %v447, %v446
        %452 = vmatpush.bf16.msra.mxu0 0
        %453 = vmatpush.bf16.msra.mxu0 0
        %454 = vmatpush.bf16.msra.mxu0 0
        %455 = vmatpush.bf16.msra.mxu0 0
        %456 = vmatpush.bf16.msra.mxu0 0
        %457 = vmatpush.bf16.msra.mxu0 0
        %458 = vmatpush.bf16.msra.mxu0 %v449
        %459 = vmatpush.bf16.msra.mxu0 %v448
        %460 = vmatmul.bf16.gmra.mxu0 %v421
        %v461 = vpop.f32.mrf.mxu0
        %v462 = vadd.f32 0.0, %v461
        %v463 = vpop.f32.mrf.mxu0
        %464 = vdwg.mxu0
        %s465 = smul.u32 %s32, 8
        %v466 = vlaneseq
        %v467 = vshrl.u32 %v466, 7
        %v468 = vstv %s465
        %v469 = vadd.s32 %v468, %v467
        %v470 = vlaneseq
        %v471 = vand.u32 %v470, 127
        %vm472 = vcmp.le.s32.totalorder %v471, %v469
        %v473 = vmul.f32 %v401, 0.35355338
        %v474 = vpack.c.bf16 %v473, %v473
        %v475 = vpack.c.bf16 %v433, %v433
        %v476 = vpack.c.bf16 %v462, %v462
        %vm477 = vcmask 64512
        %v479 = vsel %vm477, %v474, 0
        %v482 = vsel %vm477, %v475, 0
        %484 = vmatpush.bf16.xpose.msra.mxu0 0
        %485 = vmatpush.bf16.xpose.msra.mxu0 0
        %486 = vmatpush.bf16.xpose.msra.mxu0 0
        %487 = vmatpush.bf16.xpose.msra.mxu0 0
        %488 = vmatpush.bf16.xpose.msra.mxu0 0
        %489 = vmatpush.bf16.xpose.msra.mxu0 0
        %490 = vmatpush.bf16.xpose.msra.mxu0 0
        %491 = vmatpush.bf16.xpose.msra.mxu0 %v482
        %492 = vmatmul.bf16.gmra.mxu0 %v479
        %v493 = vpop.f32.mrf.mxu0
        %v494 = vadd.f32 0.0, %v493
        %v495 = vpop.f32.mrf.mxu0
        %496 = vdwg.mxu0
        %v497 = vsel %vm472, %v494, -1e+30
        %v498 = vsel %vm477, %v497, -inf
        %499 = vmax.xlane.f32.xlu0 %v498
        %v500 = vpop.xlane.xlu0 %499
        %v501 = vsub.f32 %v497, %v500
        %v502 = vmul.f32 %v501, 1.442695
        %v503 = vpow.pop %v502
        %v504 = vsel %vm477, %v503, 0.0
        %505 = vadd.xlane.f32.xlu0 %v504
        %v506 = vpop.xlane.xlu0 %505
        %v507 = vrcp.pop %v506
        %v508 = vmul.f32 %v503, %v507
        %v509 = vpack.c.bf16 %v508, %v508
        %v511 = vsel %vm477, %v509, 0
        %vm513 = vcmask 1043456
        %v515 = vsel %vm513, %v476, 0
        %517 = vmatpush.bf16.msra.mxu0 0
        %518 = vmatpush.bf16.msra.mxu0 0
        %519 = vmatpush.bf16.msra.mxu0 0
        %520 = vmatpush.bf16.msra.mxu0 0
        %521 = vmatpush.bf16.msra.mxu0 0
        %522 = vmatpush.bf16.msra.mxu0 0
        %523 = vmatpush.bf16.msra.mxu0 0
        %524 = vmatpush.bf16.msra.mxu0 %v515
        %525 = vmatmul.bf16.gmra.mxu0 %v511
        %v526 = vpop.f32.mrf.mxu0
        %v527 = vadd.f32 0.0, %v526
        %v528 = vpop.f32.mrf.mxu0
        %529 = vdwg.mxu0
        %530 = vst.msk [vmem:[#allocation2] sm:$0xff] %vm477, %v527
        %v532 = vunpack.c.l.b16 %v474
        %v533 = vpack.c.b16 %v532, %v532
        %534 = vrot.lane.b32.xlu0 %v533, 120
        %v535 = vpop.permute.xlu0 %534
        %v537 = vunpack.c.l.b16 %v475
        %v538 = vpack.c.b16 %v537, %v537
        %539 = vrot.lane.b32.xlu0 %v538, 120
        %v540 = vpop.permute.xlu0 %539
        %v542 = vsel %vm477, %v535, 0
        %v545 = vsel %vm477, %v540, 0
        %547 = vmatpush.bf16.xpose.msra.mxu0 0
        %548 = vmatpush.bf16.xpose.msra.mxu0 0
        %549 = vmatpush.bf16.xpose.msra.mxu0 0
        %550 = vmatpush.bf16.xpose.msra.mxu0 0
        %551 = vmatpush.bf16.xpose.msra.mxu0 0
        %552 = vmatpush.bf16.xpose.msra.mxu0 0
        %553 = vmatpush.bf16.xpose.msra.mxu0 0
        %554 = vmatpush.bf16.xpose.msra.mxu0 %v545
        %555 = vmatmul.bf16.gmra.mxu0 %v542
        %v556 = vpop.f32.mrf.mxu0
        %v557 = vadd.f32 0.0, %v556
        %v558 = vpop.f32.mrf.mxu0
        %559 = vdwg.mxu0
        %v560 = vsel %vm472, %v557, -1e+30
        %v561 = vsel %vm477, %v560, -inf
        %562 = vmax.xlane.f32.xlu0 %v561
        %v563 = vpop.xlane.xlu0 %562
        %v564 = vsub.f32 %v560, %v563
        %v565 = vmul.f32 %v564, 1.442695
        %v566 = vpow.pop %v565
        %v567 = vsel %vm477, %v566, 0.0
        %568 = vadd.xlane.f32.xlu0 %v567
        %v569 = vpop.xlane.xlu0 %568
        %v570 = vrcp.pop %v569
        %v571 = vmul.f32 %v566, %v570
        %v572 = vpack.c.bf16 %v571, %v571
        %v574 = vunpack.c.l.b16 %v476
        %v575 = vpack.c.b16 %v574, %v574
        %576 = vrot.lane.b32.xlu0 %v575, 120
        %v577 = vpop.permute.xlu0 %576
        %v579 = vsel %vm477, %v572, 0
        %v582 = vsel %vm513, %v577, 0
        %584 = vmatpush.bf16.msra.mxu0 0
        %585 = vmatpush.bf16.msra.mxu0 0
        %586 = vmatpush.bf16.msra.mxu0 0
        %587 = vmatpush.bf16.msra.mxu0 0
        %588 = vmatpush.bf16.msra.mxu0 0
        %589 = vmatpush.bf16.msra.mxu0 0
        %590 = vmatpush.bf16.msra.mxu0 0
        %591 = vmatpush.bf16.msra.mxu0 %v582
        %592 = vmatmul.bf16.gmra.mxu0 %v579
        %v593 = vpop.f32.mrf.mxu0
        %v594 = vadd.f32 0.0, %v593
        %v595 = vpop.f32.mrf.mxu0
        %596 = vdwg.mxu0
        %598 = vrot.lane.b32.xlu0 %v594, 8
        %v599 = vpop.permute.xlu0 %598
        %vm601 = vcmask 130112
        %602 = vst.msk [vmem:[#allocation2] sm:$0xff] %vm601, %v599
        %603 = vrot.lane.b32.xlu0 %v533, 112
        %v604 = vpop.permute.xlu0 %603
        %605 = vrot.lane.b32.xlu0 %v538, 112
        %v606 = vpop.permute.xlu0 %605
        %v608 = vsel %vm477, %v604, 0
        %v611 = vsel %vm477, %v606, 0
        %613 = vmatpush.bf16.xpose.msra.mxu0 0
        %614 = vmatpush.bf16.xpose.msra.mxu0 0
        %615 = vmatpush.bf16.xpose.msra.mxu0 0
        %616 = vmatpush.bf16.xpose.msra.mxu0 0
        %617 = vmatpush.bf16.xpose.msra.mxu0 0
        %618 = vmatpush.bf16.xpose.msra.mxu0 0
        %619 = vmatpush.bf16.xpose.msra.mxu0 0
        %620 = vmatpush.bf16.xpose.msra.mxu0 %v611
        %621 = vmatmul.bf16.gmra.mxu0 %v608
        %v622 = vpop.f32.mrf.mxu0
        %v623 = vadd.f32 0.0, %v622
        %v624 = vpop.f32.mrf.mxu0
        %625 = vdwg.mxu0
        %v626 = vsel %vm472, %v623, -1e+30
        %v627 = vsel %vm477, %v626, -inf
        %628 = vmax.xlane.f32.xlu0 %v627
        %v629 = vpop.xlane.xlu0 %628
        %v630 = vsub.f32 %v626, %v629
        %v631 = vmul.f32 %v630, 1.442695
        %v632 = vpow.pop %v631
        %v633 = vsel %vm477, %v632, 0.0
        %634 = vadd.xlane.f32.xlu0 %v633
        %v635 = vpop.xlane.xlu0 %634
        %v636 = vrcp.pop %v635
        %v637 = vmul.f32 %v632, %v636
        %v638 = vpack.c.bf16 %v637, %v637
        %639 = vrot.lane.b32.xlu0 %v575, 112
        %v640 = vpop.permute.xlu0 %639
        %v642 = vsel %vm477, %v638, 0
        %v645 = vsel %vm513, %v640, 0
        %647 = vmatpush.bf16.msra.mxu0 0
        %648 = vmatpush.bf16.msra.mxu0 0
        %649 = vmatpush.bf16.msra.mxu0 0
        %650 = vmatpush.bf16.msra.mxu0 0
        %651 = vmatpush.bf16.msra.mxu0 0
        %652 = vmatpush.bf16.msra.mxu0 0
        %653 = vmatpush.bf16.msra.mxu0 0
        %654 = vmatpush.bf16.msra.mxu0 %v645
        %655 = vmatmul.bf16.gmra.mxu0 %v642
        %v656 = vpop.f32.mrf.mxu0
        %v657 = vadd.f32 0.0, %v656
        %v658 = vpop.f32.mrf.mxu0
        %659 = vdwg.mxu0
        %661 = vrot.lane.b32.xlu0 %v657, 16
        %v662 = vpop.permute.xlu0 %661
        %vm664 = vcmask 195712
        %665 = vst.msk [vmem:[#allocation2] sm:$0xff] %vm664, %v662
        %666 = vrot.lane.b32.xlu0 %v533, 104
        %v667 = vpop.permute.xlu0 %666
        %668 = vrot.lane.b32.xlu0 %v538, 104
        %v669 = vpop.permute.xlu0 %668
        %v671 = vsel %vm477, %v667, 0
        %v674 = vsel %vm477, %v669, 0
        %676 = vmatpush.bf16.xpose.msra.mxu0 0
        %677 = vmatpush.bf16.xpose.msra.mxu0 0
        %678 = vmatpush.bf16.xpose.msra.mxu0 0
        %679 = vmatpush.bf16.xpose.msra.mxu0 0
        %680 = vmatpush.bf16.xpose.msra.mxu0 0
        %681 = vmatpush.bf16.xpose.msra.mxu0 0
        %682 = vmatpush.bf16.xpose.msra.mxu0 0
        %683 = vmatpush.bf16.xpose.msra.mxu0 %v674
        %684 = vmatmul.bf16.gmra.mxu0 %v671
        %v685 = vpop.f32.mrf.mxu0
        %v686 = vadd.f32 0.0, %v685
        %v687 = vpop.f32.mrf.mxu0
        %688 = vdwg.mxu0
        %v689 = vsel %vm472, %v686, -1e+30
        %v690 = vsel %vm477, %v689, -inf
        %691 = vmax.xlane.f32.xlu0 %v690
        %v692 = vpop.xlane.xlu0 %691
        %v693 = vsub.f32 %v689, %v692
        %v694 = vmul.f32 %v693, 1.442695
        %v695 = vpow.pop %v694
        %v696 = vsel %vm477, %v695, 0.0
        %697 = vadd.xlane.f32.xlu0 %v696
        %v698 = vpop.xlane.xlu0 %697
        %v699 = vrcp.pop %v698
        %v700 = vmul.f32 %v695, %v699
        %v701 = vpack.c.bf16 %v700, %v700
        %702 = vrot.lane.b32.xlu0 %v575, 104
        %v703 = vpop.permute.xlu0 %702
        %v705 = vsel %vm477, %v701, 0
        %v708 = vsel %vm513, %v703, 0
        %710 = vmatpush.bf16.msra.mxu0 0
        %711 = vmatpush.bf16.msra.mxu0 0
        %712 = vmatpush.bf16.msra.mxu0 0
        %713 = vmatpush.bf16.msra.mxu0 0
        %714 = vmatpush.bf16.msra.mxu0 0
        %715 = vmatpush.bf16.msra.mxu0 0
        %716 = vmatpush.bf16.msra.mxu0 0
        %717 = vmatpush.bf16.msra.mxu0 %v708
        %718 = vmatmul.bf16.gmra.mxu0 %v705
        %v719 = vpop.f32.mrf.mxu0
        %v720 = vadd.f32 0.0, %v719
        %v721 = vpop.f32.mrf.mxu0
        %722 = vdwg.mxu0
        %724 = vrot.lane.b32.xlu0 %v720, 24
        %v725 = vpop.permute.xlu0 %724
        %vm727 = vcmask 261312
        %728 = vst.msk [vmem:[#allocation2] sm:$0xff] %vm727, %v725
        %v729 = vunpack.c.l.bf16 %v369
        %v730 = vld [vmem:[#allocation2] sm:$0xff]
        %v731 = vadd.f32 %v729, %v730
        %v732 = vpack.c.bf16 %v731, %v731
        %v733 = vld [vmem:[#allocation8] sm:$0xf]
        %v734 = vld [vmem:[#allocation8 + $0x4] sm:$0xf]
        %v735 = vld [vmem:[#allocation8 + $0x8] sm:$0xf]
        %v736 = vld [vmem:[#allocation8 + $0xc] sm:$0xf]
        %v741 = vunpack.c.l.b16 %v733
        %v742 = vunpack.c.l.b16 %v734
        %v743 = vunpack.c.l.b16 %v735
        %v744 = vunpack.c.l.b16 %v736
        %v745 = vpack.c.b16 %v742, %v741
        %v746 = vpack.c.b16 %v744, %v743
        %v750 = vsel %vm387, %v732, 0
        %752 = vmatpush.bf16.msra.mxu0 0
        %753 = vmatpush.bf16.msra.mxu0 0
        %754 = vmatpush.bf16.msra.mxu0 0
        %755 = vmatpush.bf16.msra.mxu0 0
        %756 = vmatpush.bf16.msra.mxu0 0
        %757 = vmatpush.bf16.msra.mxu0 0
        %758 = vmatpush.bf16.msra.mxu0 %v746
        %759 = vmatpush.bf16.msra.mxu0 %v745
        %760 = vmatmul.bf16.gmra.mxu0 %v750
        %v761 = vpop.f32.mrf.mxu0
        %v762 = vadd.f32 0.0, %v761
        %v763 = vpop.f32.mrf.mxu0
        %764 = vdwg.mxu0
        %v765 = vmax.f32 %v762, 0.0
        %v766 = vpack.c.bf16 %v765, %v765
        %v767 = vld [vmem:[%s6] sm:$0xf]
        %v768 = vld [vmem:[%s6 + $0x4] sm:$0xf]
        %v769 = vld [vmem:[%s6 + $0x8] sm:$0xf]
        %v770 = vld [vmem:[%s6 + $0xc] sm:$0xf]
        %v771 = vld [vmem:[%s6 + $0x10] sm:$0xf]
        %v772 = vld [vmem:[%s6 + $0x14] sm:$0xf]
        %v773 = vld [vmem:[%s6 + $0x18] sm:$0xf]
        %v774 = vld [vmem:[%s6 + $0x1c] sm:$0xf]
        %v783 = vunpack.c.l.b16 %v767
        %v784 = vunpack.c.l.b16 %v768
        %v785 = vunpack.c.l.b16 %v769
        %v786 = vunpack.c.l.b16 %v770
        %v787 = vunpack.c.l.b16 %v771
        %v788 = vunpack.c.l.b16 %v772
        %v789 = vunpack.c.l.b16 %v773
        %v790 = vunpack.c.l.b16 %v774
        %v791 = vpack.c.b16 %v784, %v783
        %v792 = vpack.c.b16 %v786, %v785
        %v793 = vpack.c.b16 %v788, %v787
        %v794 = vpack.c.b16 %v790, %v789
        %vm799 = vcmask 523264
        %v801 = vsel %vm799, %v766, 0
        %803 = vmatpush.bf16.msra.mxu0 0
        %804 = vmatpush.bf16.msra.mxu0 0
        %805 = vmatpush.bf16.msra.mxu0 0
        %806 = vmatpush.bf16.msra.mxu0 0
        %807 = vmatpush.bf16.msra.mxu0 %v794
        %808 = vmatpush.bf16.msra.mxu0 %v793
        %809 = vmatpush.bf16.msra.mxu0 %v792
        %810 = vmatpush.bf16.msra.mxu0 %v791
        %811 = vmatmul.bf16.gmra.mxu0 %v801
        %v812 = vpop.f32.mrf.mxu0
        %v813 = vadd.f32 0.0, %v812
        %v814 = vpop.f32.mrf.mxu0
        %815 = vdwg.mxu0
        %v816 = vmax.f32 %v813, 0.0
        %v817 = vadd.f32 %v729, %v816
        %818 = vst.msk [vmem:[%s367] sm:$0xff] %vm387, %v817
        %s819 = sand.u32 %s208, 1
        %s820 = scalar_lea.sflag [#allocation5], %s819
        %s821 = sand.u32 %s208, 1
        %s822 = smul.addr %s821, 8
        %s823 = scalar_lea.vmem [#allocation9], %s822
        // Predicated region
        $region61: #{tpu_custom_call.1} parent=47 // pred_check
          %p824 = pneg %p218
        $region62: #{tpu_custom_call.1} parent=47 // pred_check_branch
          %826 = sbr.rel (%p824) target = $region64
        $region63: #{tpu_custom_call.1} parent=47 // pred_region
          %828 = vsyncadd %s820, 0
          %s829 = sadd.s32 %s32, %s31
          %s830 = smul.addr %s829, 8
          %s831 = scalar_lea.hbm %s7, %s830
          %s833 = sshll.u32 %s823, 4
          %s834 = int_to_ptr.vmem [resolvable:$true] %s833
          %s835 = sshll.u32 %s831, 4
          %s836 = int_to_ptr.hbm [resolvable:$true] %s835
          %838 = dma.vmem_to_hbm [thread:$0]  %s834, 128, %s836, %s820
        $region64: #{tpu_custom_call.1} parent=47 // pred_fallthru
          _
      $region48: #{tpu_custom_call.1} parent=5 // pred_fallthru
        _
      %p839 = scmp.le.s32.totalorder 2, %s22
      // Predicated region
      $region65: #{tpu_custom_call.1} parent=5 // pred_check
        %p840 = pneg %p839
      $region66: #{tpu_custom_call.1} parent=5 // pred_check_branch
        %842 = sbr.rel (%p840) target = $region68
      $region67: #{tpu_custom_call.1} parent=5 // pred_region
        %s843 = ssub.s32 %s22, 2
        // Predicated region
        $region69: #{tpu_custom_call.1} parent=67 // pred_check
          %p844 = pneg %p224
        $region70: #{tpu_custom_call.1} parent=67 // pred_check_branch
          %846 = sbr.rel (%p844) target = $region72
        $region71: #{tpu_custom_call.1} parent=67 // pred_region
          %s847 = sand.u32 %s209, 1
          %s848 = scalar_lea.sflag [#allocation5], %s847
          %s849 = sand.u32 %s209, 1
          %s850 = smul.addr %s849, 8
          %s851 = scalar_lea.vmem [#allocation9], %s850
          %853 = dma.done %s848, 128
        $region72: #{tpu_custom_call.1} parent=67 // pred_fallthru
          _
      $region68: #{tpu_custom_call.1} parent=5 // pred_fallthru
        _
    $region6: #{tpu_custom_call.1} parent=1 // loop_footer
      %s26 = sadd.s32 1, %s22
    $region7: #{tpu_custom_call.1} parent=1 // loop_footer_branch
      %21 = sbr.rel target = $region3
    $region8: #{tpu_custom_call.1} parent=1 // loop_exit
      _
    %854 = vsyncpa [#allocation4], 1
    %s855 = scalar_lea.sflag [#allocation4], 1
    %856 = vsyncpa %s855, 1
    %857 = vsyncpa [#allocation7], 1
    %s858 = scalar_lea.sflag [#allocation7], 1
    %859 = vsyncpa %s858, 1
    %860 = vsyncpa [#allocation5], 1
    %s861 = scalar_lea.sflag [#allocation5], 1
    %862 = vsyncpa %s861, 1

</llo_original>
